<compile_context>
chip_gen: v5e
topology: v5e:2x2
jax: 0.10.0
libtpu: 0.0.40
codegen_flags: <defaults>
</compile_context>

<pallas_src>
import functools

import numpy as np
import jax
import jax.numpy as jnp
from jax.experimental import pallas as pl
from jax.experimental.pallas import tpu as pltpu


def _round_up(a, b):
    return (a + b - 1) // b * b


def _cdiv(a, b):
    return (a + b - 1) // b


def _focal_kernel(x_ref, t_ref, out_ref, *, n_batch, num_class, fold, s_cols,
                  gamma, oh_pos, oh_neg, alpha, uniform_alpha):
    """One lane-tile of the focal loss partial sums.

    x_ref : (B*C*k, TL)  logits  — row (b*C + c)*k + s_hi, col s_lo
    t_ref : (B*k,   TL)  int32   — row b*k + s_hi,         col s_lo
    out_ref: (1, 2) SMEM — [ sum alpha[t] , sum (1-pt)^g*log(pt) ] for this tile
    """
    B, C, k = n_batch, num_class, fold
    pid = pl.program_id(0)
    tl = x_ref.shape[-1]

    x = x_ref[...].astype(jnp.float32)            # (B*C*k, TL)
    t = t_ref[...]                                # (B*k,   TL) int32

    # Per-lane max over every row sharing the column.  Softmax is invariant to
    # any per-sample shift and this upper-bounds each sample's class max, so
    # exp() stays <= 1 while running at full (8,128) vreg width (no per-group
    # sublane broadcast needed).
    m_all = jnp.max(x, axis=0, keepdims=True)     # (1, TL)
    ex = jnp.exp(x - m_all)                       # full-width EUP

    term_acc = jnp.zeros((k, tl), jnp.float32)
    a_acc = None if uniform_alpha else jnp.zeros((k, tl), jnp.float32)

    for b in range(B):                            # static unroll (small batch)
        t_b = t[b * k:(b + 1) * k, :]             # (k, TL)
        base = b * C * k
        denom = None
        sel = jnp.zeros((k, tl), jnp.float32)
        a_b = None if uniform_alpha else jnp.zeros((k, tl), jnp.float32)
        for c in range(C):                        # static unroll over classes
            e_bc = ex[base + c * k: base + (c + 1) * k, :]   # (k, TL)
            denom = e_bc if denom is None else denom + e_bc
            m_c = (t_b == c)
            sel = jnp.where(m_c, e_bc, sel)       # one-hot gather, no (C,TL) temp
            if not uniform_alpha:
                a_b = jnp.where(m_c, jnp.float32(alpha[c]), a_b)

        # Guard against exact-zero denominator (only reachable for pathological
        # cross-sample logit spreads > ~100 within one lane column).
        denom = jnp.maximum(denom, jnp.float32(1e-30))

        if oh_pos is None:                        # no label smoothing
            num = sel
        else:                                     # clamp(one_hot, s, 1-s) folded
            num = jnp.float32(oh_neg) * denom + jnp.float32(oh_pos - oh_neg) * sel

        # TODO(synk): on v7x consider num * pl.reciprocal(denom, approx=True);
        # kept exact here to stay bit-comparable with the reference tolerances.
        pt = num / denom + jnp.float32(1e-10)
        logpt = jnp.log(pt)
        one_m = 1.0 - pt

        g = float(gamma)
        if g == 2.0:
            pw = one_m * one_m
        elif g == 1.0:
            pw = one_m
        elif g == 0.0:
            pw = jnp.ones_like(one_m)
        elif g == 0.5:
            pw = jnp.sqrt(one_m)
        elif g == 1.5:
            pw = one_m * jnp.sqrt(one_m)
        elif g == 3.0:
            pw = one_m * one_m * one_m
        elif g == 2.5:
            pw = one_m * one_m * jnp.sqrt(one_m)
        else:
            pw = jnp.power(one_m, jnp.float32(g))

        term_acc = term_acc + pw * logpt
        if not uniform_alpha:
            a_acc = a_acc + a_b

    def _write(mask):
        if mask is None:
            t_sum = jnp.sum(term_acc)
            a_sum = jnp.float32(0.0) if uniform_alpha else jnp.sum(a_acc)
        else:
            # jnp.where (not multiply) so NaN/Inf from garbage tail lanes dies.
            t_sum = jnp.sum(jnp.where(mask, term_acc, 0.0))
            a_sum = (jnp.float32(0.0) if uniform_alpha
                     else jnp.sum(jnp.where(mask, a_acc, 0.0)))
        out_ref[0, 0] = a_sum
        out_ref[0, 1] = t_sum

    rem = s_cols % tl                             # static Python int
    if rem == 0:
        _write(None)                              # no ragged tile at all
    else:
        is_last = pid == pl.num_programs(0) - 1

        @pl.when(is_last)
        def _():
            col = jax.lax.broadcasted_iota(jnp.int32, (1, tl), 1)
            _write(col < rem)

        @pl.when(jnp.logical_not(is_last))
        def _():
            _write(None)


def multi_focal_loss(x, target, *, alpha=None, gamma=2.0, balance_index=-1,
                     smooth=None, size_average=True,
                     vmem_budget_bytes=16 * 1024 * 1024):
    """x: (N, C, ...) float logits; target: (N, ...) int class ids."""
    num_class = int(x.shape[1])

    if smooth is not None and (smooth < 0 or smooth > 1.0):
        raise ValueError('smooth value should be in [0,1]')

    # ---- alpha setup (mirrors MultiFocalLoss.__init__); always concrete ----
    uniform_alpha = alpha is None
    if alpha is None:
        alpha_t = (1.0,) * num_class
    elif isinstance(alpha, (list, tuple, np.ndarray)):
        a = np.asarray(alpha, dtype=np.float64)
        assert a.shape[0] == num_class
        a = a / a.sum()
        alpha_t = tuple(float(v) for v in a)
    elif isinstance(alpha, float):
        a = [1.0 - alpha] * num_class
        a[balance_index] = alpha
        alpha_t = tuple(float(v) for v in a)
    else:
        raise TypeError('Not support alpha type')

    # ---- layout: free reshapes only (no transpose / pad materialization) ----
    if x.ndim > 2:
        B = int(x.shape[0])
        S0 = int(np.prod(x.shape[2:]))
        arr3 = x.reshape(B, num_class, S0)                 # free
        t2d = target.reshape(B, S0)
    else:
        # (N, C) inputs: one small transpose puts classes on sublanes.
        # TODO(synk): fold this transpose into the producer if this path is hot.
        B = 1
        S0 = int(x.shape[0])
        arr3 = x.T.reshape(1, num_class, S0)
        t2d = target.reshape(1, S0)
    t2d = t2d.astype(jnp.int32)
    m_total = B * S0

    # Sample fold: pack `fold` samples per lane column so logits (B*C*fold rows)
    # and targets (B*fold rows) fill the 8-sublane tiles, keeping lanes dense.
    fold = 1
    for cand in (8, 4, 2):
        if S0 % cand == 0 and S0 // cand >= 128:
            fold = cand
            break

    S = S0 // fold
    R = B * num_class * fold
    Rt = B * fold
    x2 = arr3.reshape(R, S)                                # free reshape
    t2 = t2d.reshape(Rt, S)                                # free reshape

    # ---- lane-tile from a VMEM budget (double-buffered inputs + f32 temps) ----
    itemsize = jnp.dtype(x2.dtype).itemsize
    r_pad = _round_up(R, 8)
    rt_pad = _round_up(Rt, 8)
    per_lane = 2 * (r_pad * itemsize + rt_pad * 4) + (3 * r_pad + 8 * fold) * 4
    tl = max(128, (vmem_budget_bytes // per_lane) // 128 * 128)
    # keep >= 8 tiles for megacore load balancing when the sample axis is long
    tl = min(tl, max(128, _round_up(_cdiv(S, 8), 128)))
    if S <= tl:
        tl = S                 # single full-extent block (128-divisibility waived)
        num_tiles = 1
    else:
        num_tiles = _cdiv(S, tl)   # last tile may be ragged; masked in-kernel

    if smooth:
        oh_pos = min(max(1.0, float(smooth)), 1.0 - float(smooth))
        oh_neg = min(max(0.0, float(smooth)), 1.0 - float(smooth))
    else:
        oh_pos = oh_neg = None

    kernel = functools.partial(
        _focal_kernel, n_batch=B, num_class=num_class, fold=fold, s_cols=S,
        gamma=float(gamma), oh_pos=oh_pos, oh_neg=oh_neg, alpha=alpha_t,
        uniform_alpha=uniform_alpha)

    partials = pl.pallas_call(
        kernel,
        out_shape=jax.ShapeDtypeStruct((num_tiles, 2), jnp.float32),
        grid_spec=pltpu.PrefetchScalarGridSpec(
            num_scalar_prefetch=0,
            grid=(num_tiles,),
            in_specs=[
                pl.BlockSpec((R, tl), lambda i: (0, i)),
                pl.BlockSpec((Rt, tl), lambda i: (0, i)),
            ],
            out_specs=pl.BlockSpec((1, 2), lambda i: (i, 0),
                                   memory_space=pltpu.MemorySpace.SMEM),
        ),
        compiler_params=pltpu.CompilerParams(
            dimension_semantics=("parallel",),
            vmem_limit_bytes=32 * 1024 * 1024),
    )(x2, t2)

    term_sum = jnp.sum(partials[:, 1])
    if uniform_alpha:
        a_sum = jnp.float32(m_total)        # sum_i alpha[t_i] with alpha == 1
    else:
        a_sum = jnp.sum(partials[:, 0])

    loss = -(a_sum * term_sum)              # factored (M,1,M)-broadcast of the ref
    if size_average:
        mf = jnp.float32(m_total)
        loss = loss / (mf * mf)
    return loss


def _reference(x, target, *, alpha=None, gamma=2.0, balance_index=-1,
               smooth=None, size_average=True):
    # pure-JAX replica of the PyTorch forward (broadcast quirk, factored)
    num_class = x.shape[1]
    p = jax.nn.softmax(x.astype(jnp.float32), axis=1)
    if p.ndim > 2:
        p = jnp.moveaxis(p, 1, -1).reshape(-1, num_class)
    t = target.reshape(-1)
    if alpha is None:
        alpha_vec = jnp.ones((num_class,), jnp.float32)
    elif isinstance(alpha, float):
        alpha_vec = jnp.full((num_class,), 1.0 - alpha, jnp.float32)
        alpha_vec = alpha_vec.at[balance_index].set(alpha)
    else:
        alpha_vec = jnp.asarray(alpha, jnp.float32)
        alpha_vec = alpha_vec / jnp.sum(alpha_vec)
    one_hot = jax.nn.one_hot(t, num_class, dtype=jnp.float32)
    oh = jnp.clip(one_hot, smooth, 1.0 - smooth) if smooth else one_hot
    pt = jnp.sum(oh * p, axis=1) + 1e-10
    logpt = jnp.log(pt)
    a = alpha_vec[t]
    term = jnp.power(1.0 - pt, gamma) * logpt
    m = pt.shape[0]
    total = -(jnp.sum(a) * jnp.sum(term))
    return total / (m * m) if size_average else total


if __name__ == "__main__":
    key = jax.random.PRNGKey(0)
    kx, kt = jax.random.split(key)
    N, C, H, W = 2, 4, 16, 16
    x = jax.random.normal(kx, (N, C, H, W), dtype=jnp.float32)
    target = jax.random.randint(kt, (N, H, W), 0, C, dtype=jnp.int32)

    # default config: alpha=None, gamma=2, smooth=None, size_average=True
    loss = jax.block_until_ready(multi_focal_loss(x, target, gamma=2.0))
    ref = _reference(x, target, gamma=2.0)
    assert jnp.allclose(loss, ref, rtol=1e-4, atol=1e-5), (loss, ref)

    # non-default config: explicit alpha, non-integer gamma, smoothing, sum reduce
    alpha = [0.1, 0.2, 0.3, 0.4]
    loss2 = jax.block_until_ready(
        multi_focal_loss(x, target, alpha=alpha, gamma=1.5, smooth=0.1,
                         size_average=False))
    ref2 = _reference(x, target, alpha=alpha, gamma=1.5, smooth=0.1,
                      size_average=False)
    assert jnp.allclose(loss2, ref2, rtol=1e-4, atol=1e-3), (loss2, ref2)

    # multi-tile grid with a ragged last tile (exercises the pl.when mask path)
    x3 = jax.random.normal(kx, (2, 4, 20, 20), dtype=jnp.float32)
    t3 = jax.random.randint(kt, (2, 20, 20), 0, C, dtype=jnp.int32)
    loss3 = jax.block_until_ready(multi_focal_loss(x3, t3, gamma=2.0))
    ref3 = _reference(x3, t3, gamma=2.0)
    assert jnp.allclose(loss3, ref3, rtol=1e-4, atol=1e-5), (loss3, ref3)

    # 2-D (N, C) input path
    x2d = jax.random.normal(kx, (64, C), dtype=jnp.float32)
    t2d = jax.random.randint(kt, (64,), 0, C, dtype=jnp.int32)
    loss4 = jax.block_until_ready(multi_focal_loss(x2d, t2d))
    ref4 = _reference(x2d, t2d)
    assert jnp.allclose(loss4, ref4, rtol=1e-4, atol=1e-5), (loss4, ref4)

    print("KERNEL_OK")
</pallas_src>

<mosaic_0001>
module attributes {stable_mosaic.version = 11 : i64} {
  func.func @_focal_kernel(%arg0: i32, %arg1: memref<16x128xf32, #tpu.memory_space<vmem>>, %arg2: memref<4x128xi32, #tpu.memory_space<vmem>>, %arg3: memref<1x2xf32, #tpu.memory_space<smem>>) attributes {dimension_semantics = [#tpu.dimension_semantics<parallel>], iteration_bounds = array<i64: 1>, scalar_prefetch = 0 : i64, scratch_operands = 0 : i64, tpu.core_type = #tpu.core_type<tc>, window_params = [{transform_indices = @transform_0, window_bounds = array<i64: 16, 128>}, {transform_indices = @transform_1, window_bounds = array<i64: 4, 128>}, {transform_indices = @transform_2, window_bounds = array<i64: 1, 2>}]} {
    %c0 = arith.constant 0 : index
    %c0_0 = arith.constant 0 : index
    %0 = vector.load %arg1[%c0, %c0_0] : memref<16x128xf32, #tpu.memory_space<vmem>>, vector<16x128xf32>
    %c0_1 = arith.constant 0 : index
    %c0_2 = arith.constant 0 : index
    %1 = vector.load %arg2[%c0_1, %c0_2] : memref<4x128xi32, #tpu.memory_space<vmem>>, vector<4x128xi32>
    %cst = arith.constant dense<0xFF800000> : vector<128xf32>
    %2 = vector.multi_reduction <maximumf>, %0, %cst [0] : vector<16x128xf32> to vector<128xf32>
    %3 = vector.shape_cast %2 : vector<128xf32> to vector<1x128xf32>
    %4 = vector.broadcast %3 : vector<1x128xf32> to vector<16x128xf32>
    %5 = arith.subf %0, %4 : vector<16x128xf32>
    %6 = math.exp %5 : vector<16x128xf32>
    %cst_3 = arith.constant 0.000000e+00 : f32
    %7 = vector.broadcast %cst_3 : f32 to vector<2x128xf32>
    %8 = vector.extract_strided_slice %1 {offsets = [0, 0], sizes = [2, 128], strides = [1, 1]} : vector<4x128xi32> to vector<2x128xi32>
    %cst_4 = arith.constant 0.000000e+00 : f32
    %9 = vector.broadcast %cst_4 : f32 to vector<2x128xf32>
    %10 = vector.extract_strided_slice %6 {offsets = [0, 0], sizes = [2, 128], strides = [1, 1]} : vector<16x128xf32> to vector<2x128xf32>
    %c0_i32 = arith.constant 0 : i32
    %11 = vector.broadcast %c0_i32 : i32 to vector<2x128xi32>
    %12 = arith.cmpi eq, %8, %11 : vector<2x128xi32>
    %13 = arith.select %12, %10, %9 : vector<2x128xi1>, vector<2x128xf32>
    %14 = vector.extract_strided_slice %6 {offsets = [2, 0], sizes = [2, 128], strides = [1, 1]} : vector<16x128xf32> to vector<2x128xf32>
    %15 = arith.addf %10, %14 : vector<2x128xf32>
    %c1_i32 = arith.constant 1 : i32
    %16 = vector.broadcast %c1_i32 : i32 to vector<2x128xi32>
    %17 = arith.cmpi eq, %8, %16 : vector<2x128xi32>
    %18 = arith.select %17, %14, %13 : vector<2x128xi1>, vector<2x128xf32>
    %19 = vector.extract_strided_slice %6 {offsets = [4, 0], sizes = [2, 128], strides = [1, 1]} : vector<16x128xf32> to vector<2x128xf32>
    %20 = arith.addf %15, %19 : vector<2x128xf32>
    %c2_i32 = arith.constant 2 : i32
    %21 = vector.broadcast %c2_i32 : i32 to vector<2x128xi32>
    %22 = arith.cmpi eq, %8, %21 : vector<2x128xi32>
    %23 = arith.select %22, %19, %18 : vector<2x128xi1>, vector<2x128xf32>
    %24 = vector.extract_strided_slice %6 {offsets = [6, 0], sizes = [2, 128], strides = [1, 1]} : vector<16x128xf32> to vector<2x128xf32>
    %25 = arith.addf %20, %24 : vector<2x128xf32>
    %c3_i32 = arith.constant 3 : i32
    %26 = vector.broadcast %c3_i32 : i32 to vector<2x128xi32>
    %27 = arith.cmpi eq, %8, %26 : vector<2x128xi32>
    %28 = arith.select %27, %24, %23 : vector<2x128xi1>, vector<2x128xf32>
    %cst_5 = arith.constant 1.000000e-30 : f32
    %29 = vector.broadcast %cst_5 : f32 to vector<2x128xf32>
    %30 = arith.maximumf %25, %29 : vector<2x128xf32>
    %31 = arith.divf %28, %30 : vector<2x128xf32>
    %cst_6 = arith.constant 1.000000e-10 : f32
    %32 = vector.broadcast %cst_6 : f32 to vector<2x128xf32>
    %33 = arith.addf %31, %32 : vector<2x128xf32>
    %34 = math.log %33 : vector<2x128xf32>
    %cst_7 = arith.constant 1.000000e+00 : f32
    %35 = vector.broadcast %cst_7 : f32 to vector<2x128xf32>
    %36 = arith.subf %35, %33 : vector<2x128xf32>
    %37 = arith.mulf %36, %36 : vector<2x128xf32>
    %38 = arith.mulf %37, %34 : vector<2x128xf32>
    %39 = arith.addf %7, %38 : vector<2x128xf32>
    %40 = vector.extract_strided_slice %1 {offsets = [2, 0], sizes = [2, 128], strides = [1, 1]} : vector<4x128xi32> to vector<2x128xi32>
    %cst_8 = arith.constant 0.000000e+00 : f32
    %41 = vector.broadcast %cst_8 : f32 to vector<2x128xf32>
    %42 = vector.extract_strided_slice %6 {offsets = [8, 0], sizes = [2, 128], strides = [1, 1]} : vector<16x128xf32> to vector<2x128xf32>
    %c0_i32_9 = arith.constant 0 : i32
    %43 = vector.broadcast %c0_i32_9 : i32 to vector<2x128xi32>
    %44 = arith.cmpi eq, %40, %43 : vector<2x128xi32>
    %45 = arith.select %44, %42, %41 : vector<2x128xi1>, vector<2x128xf32>
    %46 = vector.extract_strided_slice %6 {offsets = [10, 0], sizes = [2, 128], strides = [1, 1]} : vector<16x128xf32> to vector<2x128xf32>
    %47 = arith.addf %42, %46 : vector<2x128xf32>
    %c1_i32_10 = arith.constant 1 : i32
    %48 = vector.broadcast %c1_i32_10 : i32 to vector<2x128xi32>
    %49 = arith.cmpi eq, %40, %48 : vector<2x128xi32>
    %50 = arith.select %49, %46, %45 : vector<2x128xi1>, vector<2x128xf32>
    %51 = vector.extract_strided_slice %6 {offsets = [12, 0], sizes = [2, 128], strides = [1, 1]} : vector<16x128xf32> to vector<2x128xf32>
    %52 = arith.addf %47, %51 : vector<2x128xf32>
    %c2_i32_11 = arith.constant 2 : i32
    %53 = vector.broadcast %c2_i32_11 : i32 to vector<2x128xi32>
    %54 = arith.cmpi eq, %40, %53 : vector<2x128xi32>
    %55 = arith.select %54, %51, %50 : vector<2x128xi1>, vector<2x128xf32>
    %56 = vector.extract_strided_slice %6 {offsets = [14, 0], sizes = [2, 128], strides = [1, 1]} : vector<16x128xf32> to vector<2x128xf32>
    %57 = arith.addf %52, %56 : vector<2x128xf32>
    %c3_i32_12 = arith.constant 3 : i32
    %58 = vector.broadcast %c3_i32_12 : i32 to vector<2x128xi32>
    %59 = arith.cmpi eq, %40, %58 : vector<2x128xi32>
    %60 = arith.select %59, %56, %55 : vector<2x128xi1>, vector<2x128xf32>
    %cst_13 = arith.constant 1.000000e-30 : f32
    %61 = vector.broadcast %cst_13 : f32 to vector<2x128xf32>
    %62 = arith.maximumf %57, %61 : vector<2x128xf32>
    %63 = arith.divf %60, %62 : vector<2x128xf32>
    %cst_14 = arith.constant 1.000000e-10 : f32
    %64 = vector.broadcast %cst_14 : f32 to vector<2x128xf32>
    %65 = arith.addf %63, %64 : vector<2x128xf32>
    %66 = math.log %65 : vector<2x128xf32>
    %cst_15 = arith.constant 1.000000e+00 : f32
    %67 = vector.broadcast %cst_15 : f32 to vector<2x128xf32>
    %68 = arith.subf %67, %65 : vector<2x128xf32>
    %69 = arith.mulf %68, %68 : vector<2x128xf32>
    %70 = arith.mulf %69, %66 : vector<2x128xf32>
    %71 = arith.addf %39, %70 : vector<2x128xf32>
    %72 = vector.shape_cast %71 : vector<2x128xf32> to vector<1x2x128xf32>
    %cst_16 = arith.constant dense<0.000000e+00> : vector<1xf32>
    %73 = vector.multi_reduction <add>, %72, %cst_16 [1, 2] : vector<1x2x128xf32> to vector<1xf32>
    %74 = vector.shape_cast %73 : vector<1xf32> to vector<1x1x1xf32>
    %75 = vector.extract %74[0, 0, 0] : f32 from vector<1x1x1xf32>
    %cst_17 = arith.constant 0.000000e+00 : f32
    %c0_18 = arith.constant 0 : index
    %c0_19 = arith.constant 0 : index
    %76 = memref.load %arg3[%c0_18, %c0_19] : memref<1x2xf32, #tpu.memory_space<smem>>
    memref.store %cst_17, %arg3[%c0_18, %c0_19] : memref<1x2xf32, #tpu.memory_space<smem>>
    %c0_20 = arith.constant 0 : index
    %c1 = arith.constant 1 : index
    %77 = memref.load %arg3[%c0_20, %c1] : memref<1x2xf32, #tpu.memory_space<smem>>
    memref.store %75, %arg3[%c0_20, %c1] : memref<1x2xf32, #tpu.memory_space<smem>>
    return
  }
  func.func @transform_0(%arg0: i32) -> (i32, i32) {
    %c0_i32 = arith.constant 0 : i32
    %c0_i32_0 = arith.constant 0 : i32
    return %c0_i32, %arg0 : i32, i32
  }
  func.func @transform_1(%arg0: i32) -> (i32, i32) {
    %c0_i32 = arith.constant 0 : i32
    %c0_i32_0 = arith.constant 0 : i32
    return %c0_i32, %arg0 : i32, i32
  }
  func.func @transform_2(%arg0: i32) -> (i32, i32) {
    %c0_i32 = arith.constant 0 : i32
    %c0_i32_0 = arith.constant 0 : i32
    return %arg0, %c0_i32 : i32, i32
  }
}

</mosaic_0001>

<llo_original>
// kernel: tpu_custom_call.1
$region0: #{tpu_custom_call.1}
  #allocation0 [shape = 'u32[]', space=smem, size = 0x4, offset = 0x4, fixed_abs, tag = 'smem constant byte address 0x4 - core index']
  #allocation1 [shape = 'u32[72,128]{1,0:T(1,128)}', space=vmem, size = 0x9000, scoped, tag = 'internal scratch']
  %s0 = inlined_call_operand.hbm [shape: f32[16,128], index: 0, kind: input, shape index: {}]
  %s1 = inlined_call_operand.hbm [shape: s32[4,128], index: 1, kind: input, shape index: {}]
  %s2 = inlined_call_operand.hbm [shape: f32[1,2], index: 2, kind: output, shape index: {}]
  %s3 = sld [smem:[#allocation0]]
  $region26: #{tpu_custom_call.1} parent=0
    _
  %s5 = ssub.s32 1, %s3
  %s6 = scalar_select 0, %s5, %s3
  $region1: #{tpu_custom_call.1} parent=0
    #allocation2 [shape = 'u8[8192]{0}', space=vmem, size = 0x2000, scoped, tag = 'input window, operand 0, single buffered']
    #allocation3 [shape = 's32[1]{0}', space=sflag, size = 0x4, scoped, tag = 'scoped memory for tpu_custom_call.1']
    #allocation4 [shape = 's32[1]{0}', space=sflag, size = 0x4, scoped, tag = 'scoped memory for tpu_custom_call.1']
    #allocation5 [shape = 'u8[2048]{0}', space=vmem, size = 0x800, scoped, tag = 'input window, operand 1, single buffered']
    #allocation6 [shape = 's32[1]{0}', space=sflag, size = 0x4, scoped, tag = 'scoped memory for tpu_custom_call.1']
    #allocation7 [shape = 'u8[512]{0}', space=smem, size = 0x200, scoped, tag = 'output window, operand 0, single buffered']
    %7 = vsyncpa [#allocation3], 0
    %8 = vsyncpa [#allocation6], 0
    %9 = vsyncpa [#allocation4], 0
    // Predicated region
    $region2: #{tpu_custom_call.1} parent=1 // pred_check
      _
    $region3: #{tpu_custom_call.1} parent=1 // pred_check_branch
      %11 = sbr.rel (0) target = $region5
    $region4: #{tpu_custom_call.1} parent=1 // pred_region
      %13 = vsyncadd [#allocation3], 0
      %s14 = sshll.u32 %s0, 4
      %s15 = int_to_ptr.hbm [resolvable:$true] %s14
      %s16 = sshll.u32 [#allocation2], 4
      %s17 = int_to_ptr.vmem [resolvable:$true] %s16
      %22 = dma.hbm_to_vmem [thread:$0]  %s15, 256, %s17, [#allocation3], 128, 128, 8
    $region5: #{tpu_custom_call.1} parent=1 // pred_fallthru
      _
    // Predicated region
    $region6: #{tpu_custom_call.1} parent=1 // pred_check
      _
    $region7: #{tpu_custom_call.1} parent=1 // pred_check_branch
      %24 = sbr.rel (0) target = $region9
    $region8: #{tpu_custom_call.1} parent=1 // pred_region
      %26 = vsyncadd [#allocation6], 0
      %s28 = sshll.u32 %s1, 4
      %s29 = int_to_ptr.hbm [resolvable:$true] %s28
      %s30 = sshll.u32 [#allocation5], 4
      %s31 = int_to_ptr.vmem [resolvable:$true] %s30
      %33 = dma.hbm_to_vmem [thread:$0]  %s29, 64, %s31, [#allocation6]
    $region9: #{tpu_custom_call.1} parent=1 // pred_fallthru
      _
    // Predicated region
    $region10: #{tpu_custom_call.1} parent=1 // pred_check
      _
    $region11: #{tpu_custom_call.1} parent=1 // pred_check_branch
      %35 = sbr.rel (0) target = $region13
    $region12: #{tpu_custom_call.1} parent=1 // pred_region
      %37 = dma.done [#allocation3], 256
    $region13: #{tpu_custom_call.1} parent=1 // pred_fallthru
      _
    // Predicated region
    $region14: #{tpu_custom_call.1} parent=1 // pred_check
      _
    $region15: #{tpu_custom_call.1} parent=1 // pred_check_branch
      %39 = sbr.rel (0) target = $region17
    $region16: #{tpu_custom_call.1} parent=1 // pred_region
      %41 = dma.done [#allocation6], 64
    $region17: #{tpu_custom_call.1} parent=1 // pred_fallthru
      _
    %v42 = vld [vmem:[#allocation2] sm:$0xff]
    %v43 = vld [vmem:[#allocation2 + $0x8] sm:$0xff]
    %v44 = vld [vmem:[#allocation5] sm:$0xf]
    %v45 = vmax.f32 %v42, %v43
    %v46 = vrot.slane %v45, 4
    %v47 = vmax.f32 %v45, %v46
    %v48 = vrot.slane %v47, 2
    %v49 = vmax.f32 %v47, %v48
    %v50 = vrot.slane %v49, 1
    %v51 = vmax.f32 %v49, %v50
    %v52 = vsub.f32 %v42, %v51
    %v53 = vsub.f32 %v43, %v51
    %v54 = vmul.f32 %v52, 1.442695
    %v55 = vpow.pop %v54
    %v56 = vmul.f32 %v53, 1.442695
    %v57 = vpow.pop %v56
    %vm58 = vcmp.eq.s32.totalorder %v44, 0
    %v59 = vsel %vm58, %v55, 0.0
    %v61 = vrot.slane %v55, 2
    %v63 = vadd.f32 %v55, %v61
    %vm64 = vcmp.eq.s32.totalorder %v44, 1
    %v65 = vsel %vm64, %v61, %v59
    %v66 = vrot.slane %v55, 4
    %v68 = vadd.f32 %v63, %v66
    %vm69 = vcmp.eq.s32.totalorder %v44, 2
    %v70 = vsel %vm69, %v66, %v65
    %v71 = vrot.slane %v55, 6
    %v73 = vadd.f32 %v68, %v71
    %vm74 = vcmp.eq.s32.totalorder %v44, 3
    %v75 = vsel %vm74, %v71, %v70
    %v76 = vmax.f32 %v73, 1e-30
    %v77 = vrcp.pop %v76
    %v78 = vmul.f32 %v76, %v77
    %v79 = vsub.f32 1.0, %v78
    %v80 = vmul.f32 %v77, %v79
    %v81 = vadd.f32 %v77, %v80
    %vm82 = vweird.f32 %v76
    %vm83 = vweird.f32 %v77
    %vm84 = vmor %vm82, %vm83
    %v85 = vsel %vm84, %v77, %v81
    %v86 = vand.u32 2147483647, %v76
    %vm87 = vcmp.eq.f32.partialorder %v86, 8.507059e+37
    %v88 = vand.u32 %v76, 2147483648
    %v89 = vor.u32 1.1754944e-38, %v88
    %v90 = vsel %vm87, %v89, %v85
    %v91 = vmul.f32 %v75, %v90
    %v92 = vadd.f32 %v91, 1e-10
    %v93 = vlog2.pop %v92
    %v94 = vmul.f32 %v93, 0.6931472
    %v95 = vsub.f32 1.0, %v92
    %v96 = vmul.f32 %v95, %v95
    %v97 = vmul.f32 %v96, %v94
    %v98 = vadd.f32 %v97, 0.0
    %v100 = vrot.slane %v57, 6
    %v102 = vsel %vm58, %v100, 0.0
    %v103 = vrot.slane %v57, 2
    %v105 = vadd.f32 %v57, %v103
    %v106 = vsel %vm64, %v57, %v102
    %v107 = vrot.slane %v57, 4
    %v109 = vadd.f32 %v105, %v107
    %v110 = vsel %vm69, %v103, %v106
    %v111 = vadd.f32 %v109, %v100
    %v112 = vsel %vm74, %v107, %v110
    %v113 = vmax.f32 %v111, 1e-30
    %v115 = vrot.slane %v113, 6
    %v117 = vrcp.pop %v115
    %v118 = vmul.f32 %v115, %v117
    %v119 = vsub.f32 1.0, %v118
    %v120 = vmul.f32 %v117, %v119
    %v121 = vadd.f32 %v117, %v120
    %vm122 = vweird.f32 %v115
    %vm123 = vweird.f32 %v117
    %vm124 = vmor %vm122, %vm123
    %v125 = vsel %vm124, %v117, %v121
    %v126 = vand.u32 2147483647, %v115
    %vm127 = vcmp.eq.f32.partialorder %v126, 8.507059e+37
    %v128 = vand.u32 %v115, 2147483648
    %v129 = vor.u32 1.1754944e-38, %v128
    %v130 = vsel %vm127, %v129, %v125
    %v131 = vmul.f32 %v112, %v130
    %v132 = vadd.f32 %v131, 1e-10
    %v133 = vlog2.pop %v132
    %v134 = vmul.f32 %v133, 0.6931472
    %v135 = vsub.f32 1.0, %v132
    %v136 = vmul.f32 %v135, %v135
    %v137 = vmul.f32 %v136, %v134
    %v139 = vrot.slane %v137, 2
    %v141 = vadd.f32 %v98, %v139
    %vm142 = vcmask 1041408
    %v143 = vsel %vm142, %v141, 0.0
    %144 = vadd.xlane.f32.xlu0 %v143
    %v145 = vpop.xlane.xlu0 %144
    %v146 = vrot.slane %v145, 4
    %v147 = vadd.f32 %v145, %v146
    %v148 = vrot.slane %v147, 2
    %v149 = vadd.f32 %v147, %v148
    %v150 = vrot.slane %v149, 1
    %v151 = vadd.f32 %v149, %v150
    %s152 = vtos %v151
    %s153 = scalar_lea.smem [#allocation7], 0
    %154 = sst [smem:[%s153]] 0.0
    %s155 = scalar_lea.smem [#allocation7], 1
    %156 = sst [smem:[%s155]] %s152
    // Predicated region
    $region18: #{tpu_custom_call.1} parent=1 // pred_check
      _
    $region19: #{tpu_custom_call.1} parent=1 // pred_check_branch
      %158 = sbr.rel (0) target = $region21
    $region20: #{tpu_custom_call.1} parent=1 // pred_region
      %160 = vsyncadd [#allocation4], 0
      %s162 = sshll.u32 %s2, 4
      %s163 = int_to_ptr.hbm [resolvable:$true] %s162
      %165 = dma.smem_to_hbm [#allocation7], 16, %s163, [#allocation4]
    $region21: #{tpu_custom_call.1} parent=1 // pred_fallthru
      _
    // Predicated region
    $region22: #{tpu_custom_call.1} parent=1 // pred_check
      _
    $region23: #{tpu_custom_call.1} parent=1 // pred_check_branch
      %167 = sbr.rel (0) target = $region25
    $region24: #{tpu_custom_call.1} parent=1 // pred_region
      %169 = dma.done [#allocation4], 16
    $region25: #{tpu_custom_call.1} parent=1 // pred_fallthru
      _
    %170 = sfence
    %171 = vsyncpa [#allocation3], 1
    %172 = vsyncpa [#allocation6], 1
    %173 = vsyncpa [#allocation4], 1

</llo_original>
